<compile_context>
chip_gen: v7x
topology: tpu7x:2x2x1
jax: 0.10.0
libtpu: 0.0.40
codegen_flags: <defaults>
</compile_context>

<pallas_src>
import functools

import jax
import jax.numpy as jnp
from jax.experimental import pallas as pl
from jax.experimental.pallas import tpu as pltpu

LANE = 128


# ----------------------------------------------------------------------------
# Kernel
# ----------------------------------------------------------------------------
def _fused_linear_kernel(x_ref, w_ref, b_ref, out_ref):
    """out = x @ W_packed + b_packed, accumulated over the K grid axis.

    Grid: (M//tm, 2N//tn, K//tk), K last ('arbitrary').  The f32 output block is
    resident across K (its index_map ignores k), so partial sums accumulate in
    f32 directly in out_ref.  Bias is folded into the k == 0 init.
    """
    @pl.when(pl.program_id(2) == 0)
    def _():
        out_ref[...] = jnp.broadcast_to(b_ref[...], out_ref.shape)

    out_ref[...] += jnp.dot(
        x_ref[...], w_ref[...], preferred_element_type=jnp.float32
    )


# ----------------------------------------------------------------------------
# Parameter packing (one-time, outside the hot path)
# ----------------------------------------------------------------------------
def _round_up(x, m):
    return ((x + m - 1) // m) * m


def pack_params(w_mu, b_mu, w_lv, b_lv, *, param_dtype=jnp.bfloat16):
    """Pack PyTorch-style (N, K) Linear weights into a single (Kp, 2Np) slab.

    Transpose, concat, pad to lane multiples and cast to `param_dtype` ONCE at
    parameter-load time, so the per-call forward never touches the weights.
    Bias stays f32 (it seeds the f32 accumulator).
    """
    N, K = w_mu.shape
    Kp = _round_up(K, LANE)
    N2 = 2 * N
    N2p = _round_up(N2, LANE)

    w = jnp.concatenate([w_mu.T, w_lv.T], axis=1)                     # (K, 2N)
    w = jnp.pad(w, ((0, Kp - K), (0, N2p - N2))).astype(param_dtype)  # (Kp, 2Np)

    b = jnp.concatenate([b_mu, b_lv]).astype(jnp.float32)
    b = jnp.pad(b, (0, N2p - N2)).reshape(1, N2p)                     # (1, 2Np)
    return w, b


# ----------------------------------------------------------------------------
# Tiling helpers
# ----------------------------------------------------------------------------
def _pad_and_tile(dim, base, cap):
    """Pad `dim` to a tileable size and pick the tile (<= cap, multiple of base)."""
    padded = _round_up(dim, base)
    tile = min(padded, cap)
    padded = _round_up(padded, tile)
    return padded, tile


def _divisor_tile(padded, cap, *, unit=LANE, min_steps=1):
    """Largest multiple of `unit` that divides `padded`, is <= cap, and gives at
    least `min_steps` grid steps.  `padded` must be a multiple of `unit`."""
    n_units = padded // unit
    g0 = max(min_steps, -(-padded // cap))          # ceil(padded / cap)
    for g in range(g0, n_units + 1):
        if n_units % g == 0:
            return (n_units // g) * unit
    return unit


# ----------------------------------------------------------------------------
# Forward wrapper
# ----------------------------------------------------------------------------
def linear_feature_compressor(feats, w_packed, b_packed, *, out_channels_content):
    """Pallas forward of LinearFeatureCompressor.

    feats    : (B, ...) activations, flattened to (B, K) here (layout glue).
    w_packed : (Kp, 2Np) pre-padded bf16 [W_mu^T | W_logvar^T] (from pack_params).
    b_packed : (1, 2Np)  pre-padded f32  [b_mu | b_logvar].
    Returns (mu, logvar), each (B, N), in feats.dtype.
    """
    B = feats.shape[0]
    x = feats.reshape(B, -1)                                   # (B, K)
    K = x.shape[1]
    N = out_channels_content

    Kp, N2p = w_packed.shape                                   # pre-padded
    assert Kp >= K and N2p >= 2 * N

    compute_dtype = w_packed.dtype
    x = x.astype(compute_dtype)
    x_bytes = jnp.dtype(compute_dtype).itemsize
    w_bytes = x_bytes

    # Generation-aware caps: v5e/v6e (128 MiB VMEM) take bigger tiles; v7x
    # (64 MiB per TC) keeps conservative caps and scoped-VMEM headroom.
    try:
        info = pltpu.get_tpu_info()
        vmem_cap = int(getattr(info, "vmem_capacity_bytes", 64 << 20))
    except Exception:
        vmem_cap = 64 << 20
    big_vmem = vmem_cap >= (100 << 20)
    tk_cap = 4096 if big_vmem else 2048
    tn_cap = 1024 if big_vmem else 512

    # Batch tile: dtype-aware sublane base (f32:8, bf16:16, int8/fp8:32).
    base_m = {4: 8, 2: 16, 1: 32}.get(x_bytes, 8)
    Mp, tm = _pad_and_tile(B, base_m, 256)

    # Weight tiles must divide the pre-padded slab => no per-call weight pad.
    tk = _divisor_tile(Kp, tk_cap)
    # >= 2 steps along the lane-dense output axis so v7x's 2 TensorCores split
    # the weight stream (each half stays a multiple of 128 lanes).
    tn = _divisor_tile(N2p, tn_cap, min_steps=2 if N2p // LANE >= 2 else 1)

    # Only the (small) activation is padded per call; zero padding is exact.
    x_p = x if (Mp == B and Kp == K) else jnp.pad(x, ((0, Mp - B), (0, Kp - K)))

    k_steps = Kp // tk
    grid = (Mp // tm, N2p // tn, k_steps)

    w_map = lambda i, j, k: (k, j)
    if k_steps > 2 and hasattr(pl, "Buffered"):
        # Deeper pipelining on the dominant weight stream for large K.
        w_spec = pl.BlockSpec((tk, tn), w_map, pipeline_mode=pl.Buffered(3))
        n_w_buf = 3
    else:
        w_spec = pl.BlockSpec((tk, tn), w_map)
        n_w_buf = 2

    vmem_need = (2 * tm * tk * x_bytes            # x double buffer
                 + n_w_buf * tk * tn * w_bytes    # weight buffers
                 + 2 * tm * tn * 4                # f32 output buffers
                 + 2 * tn * 4)                    # bias
    vmem_limit = int(min(100 << 20 if big_vmem else 48 << 20,
                         max(16 << 20, 2 * vmem_need)))

    cost = pl.CostEstimate(
        flops=2 * Mp * Kp * N2p,
        transcendentals=0,
        bytes_accessed=(Mp * Kp * x_bytes + Kp * N2p * w_bytes
                        + Mp * N2p * 4 + N2p * 4),
    )

    out = pl.pallas_call(
        _fused_linear_kernel,
        out_shape=jax.ShapeDtypeStruct((Mp, N2p), jnp.float32),
        grid_spec=pltpu.PrefetchScalarGridSpec(
            num_scalar_prefetch=0,
            grid=grid,
            in_specs=[
                pl.BlockSpec((tm, tk), lambda i, j, k: (i, k)),   # x
                w_spec,                                           # packed W
                pl.BlockSpec((1, tn), lambda i, j, k: (0, j)),    # packed bias
            ],
            out_specs=pl.BlockSpec((tm, tn), lambda i, j, k: (i, j)),
        ),
        compiler_params=pltpu.CompilerParams(
            dimension_semantics=("parallel", "parallel", "arbitrary"),
            vmem_limit_bytes=vmem_limit,
        ),
        cost_estimate=cost,
    )(x_p, w_packed, b_packed)

    mu = out[:B, :N].astype(feats.dtype)
    logvar = out[:B, N:2 * N].astype(feats.dtype)
    return mu, logvar


# ----------------------------------------------------------------------------
# Parameter init (nn.Linear default: uniform(-1/sqrt(K), 1/sqrt(K)))
# ----------------------------------------------------------------------------
def init_params(key, in_channels, out_channels_content, dtype=jnp.float32):
    k1, k2, k3, k4 = jax.random.split(key, 4)
    bound = 1.0 / jnp.sqrt(jnp.float32(in_channels))
    w_mu = jax.random.uniform(k1, (out_channels_content, in_channels), dtype, -bound, bound)
    b_mu = jax.random.uniform(k2, (out_channels_content,), dtype, -bound, bound)
    w_lv = jax.random.uniform(k3, (out_channels_content, in_channels), dtype, -bound, bound)
    b_lv = jax.random.uniform(k4, (out_channels_content,), dtype, -bound, bound)
    return w_mu, b_mu, w_lv, b_lv


if __name__ == "__main__":
    key = jax.random.PRNGKey(0)
    kx, kp = jax.random.split(key)

    # Small shapes consistent with the module: encoder features in NCHW.
    B, C, H, W = 2, 4, 16, 16                 # flattened in_channels = 1024
    out_channels_content = 128
    out_channels_style = 16                   # unused by forward (as in PyTorch)

    in_channels = C * H * W
    feats = jax.random.normal(kx, (B, C, H, W), dtype=jnp.float32)
    w_mu, b_mu, w_lv, b_lv = init_params(kp, in_channels, out_channels_content)

    # One-time weight packing (transpose + concat + pad + bf16 cast, off hot path).
    w_packed, b_packed = pack_params(w_mu, b_mu, w_lv, b_lv)

    fwd = jax.jit(functools.partial(linear_feature_compressor,
                                    out_channels_content=out_channels_content))
    mu, logvar = fwd(feats, w_packed, b_packed)
    jax.block_until_ready((mu, logvar))

    # References.
    x2 = feats.reshape(B, -1)
    xb = x2.astype(jnp.bfloat16)
    # Same weight quantization as the kernel (bf16 operands, f32 accumulation).
    mu_ref = jnp.dot(xb, w_mu.T.astype(jnp.bfloat16),
                     preferred_element_type=jnp.float32) + b_mu
    lv_ref = jnp.dot(xb, w_lv.T.astype(jnp.bfloat16),
                     preferred_element_type=jnp.float32) + b_lv
    # Full-precision sanity reference (loose tolerance covers the bf16 cast).
    mu_f32 = x2 @ w_mu.T + b_mu
    lv_f32 = x2 @ w_lv.T + b_lv

    assert mu.shape == (B, out_channels_content)
    assert logvar.shape == (B, out_channels_content)
    assert jnp.allclose(mu, mu_ref, atol=1e-3, rtol=1e-3)
    assert jnp.allclose(logvar, lv_ref, atol=1e-3, rtol=1e-3)
    assert jnp.allclose(mu, mu_f32, atol=1e-1, rtol=1e-1)
    assert jnp.allclose(logvar, lv_f32, atol=1e-1, rtol=1e-1)

    print("KERNEL_OK")
</pallas_src>

<mosaic_0001>
module attributes {stable_mosaic.version = 11 : i64} {
  func.func @_fused_linear_kernel(%arg0: i32, %arg1: i32, %arg2: i32, %arg3: memref<16x1024xbf16, #tpu.memory_space<vmem>>, %arg4: memref<1024x128xbf16, #tpu.memory_space<vmem>>, %arg5: memref<1x128xf32, #tpu.memory_space<vmem>>, %arg6: memref<16x128xf32, #tpu.memory_space<vmem>>) attributes {dimension_semantics = [#tpu.dimension_semantics<parallel>, #tpu.dimension_semantics<parallel>, #tpu.dimension_semantics<arbitrary>], iteration_bounds = array<i64: 1, 2, 1>, scalar_prefetch = 0 : i64, scratch_operands = 0 : i64, tpu.core_type = #tpu.core_type<tc>, window_params = [{transform_indices = @transform_0, window_bounds = array<i64: 16, 1024>}, {transform_indices = @transform_1, window_bounds = array<i64: 1024, 128>}, {transform_indices = @transform_2, window_bounds = array<i64: 1, 128>}, {transform_indices = @transform_3, window_bounds = array<i64: 16, 128>}]} {
    %c0_i32 = arith.constant 0 : i32
    %0 = arith.cmpi eq, %arg2, %c0_i32 : i32
    %1 = arith.extui %0 : i1 to i32
    %c0_i32_0 = arith.constant 0 : i32
    %2 = arith.cmpi ne, %1, %c0_i32_0 : i32
    scf.if %2 {
      %c0_8 = arith.constant 0 : index
      %c0_9 = arith.constant 0 : index
      %9 = vector.load %arg5[%c0_8, %c0_9] : memref<1x128xf32, #tpu.memory_space<vmem>>, vector<1x128xf32>
      %10 = vector.shape_cast %9 : vector<1x128xf32> to vector<1x128xf32>
      %11 = vector.broadcast %10 : vector<1x128xf32> to vector<16x128xf32>
      %c0_10 = arith.constant 0 : index
      %c0_11 = arith.constant 0 : index
      %12 = vector.load %arg6[%c0_10, %c0_11] : memref<16x128xf32, #tpu.memory_space<vmem>>, vector<16x128xf32>
      tpu.vector_store %arg6[%c0_10, %c0_11], %11 {strides = array<i32>} : memref<16x128xf32, #tpu.memory_space<vmem>>, vector<16x128xf32>,
    } else {
    }
    %c0 = arith.constant 0 : index
    %c0_1 = arith.constant 0 : index
    %3 = vector.load %arg6[%c0, %c0_1] : memref<16x128xf32, #tpu.memory_space<vmem>>, vector<16x128xf32>
    %c0_2 = arith.constant 0 : index
    %c0_3 = arith.constant 0 : index
    %4 = vector.load %arg3[%c0_2, %c0_3] : memref<16x1024xbf16, #tpu.memory_space<vmem>>, vector<16x1024xbf16>
    %c0_4 = arith.constant 0 : index
    %c0_5 = arith.constant 0 : index
    %5 = vector.load %arg4[%c0_4, %c0_5] : memref<1024x128xbf16, #tpu.memory_space<vmem>>, vector<1024x128xbf16>
    %cst = arith.constant dense<0.000000e+00> : vector<16x128xf32>
    %6 = tpu.matmul %4, %5, %cst {dimension_numbers = #tpu.dot_dimension_numbers<[1], [0], [0], [1], [0, 0, 1, 1], [], []>} : vector<16x1024xbf16>, vector<1024x128xbf16>, vector<16x128xf32> -> vector<16x128xf32>
    %7 = arith.addf %3, %6 : vector<16x128xf32>
    %c0_6 = arith.constant 0 : index
    %c0_7 = arith.constant 0 : index
    %8 = vector.load %arg6[%c0_6, %c0_7] : memref<16x128xf32, #tpu.memory_space<vmem>>, vector<16x128xf32>
    tpu.vector_store %arg6[%c0_6, %c0_7], %7 {strides = array<i32>} : memref<16x128xf32, #tpu.memory_space<vmem>>, vector<16x128xf32>,
    return
  }
  func.func @transform_0(%arg0: i32, %arg1: i32, %arg2: i32) -> (i32, i32) {
    %c0_i32 = arith.constant 0 : i32
    return %arg0, %arg2 : i32, i32
  }
  func.func @transform_1(%arg0: i32, %arg1: i32, %arg2: i32) -> (i32, i32) {
    %c0_i32 = arith.constant 0 : i32
    return %arg2, %arg1 : i32, i32
  }
  func.func @transform_2(%arg0: i32, %arg1: i32, %arg2: i32) -> (i32, i32) {
    %c0_i32 = arith.constant 0 : i32
    %c0_i32_0 = arith.constant 0 : i32
    return %c0_i32, %arg1 : i32, i32
  }
  func.func @transform_3(%arg0: i32, %arg1: i32, %arg2: i32) -> (i32, i32) {
    %c0_i32 = arith.constant 0 : i32
    return %arg0, %arg1 : i32, i32
  }
}

</mosaic_0001>

<llo_original>
// kernel: linear_feature_compressor.1
$region0: #{linear_feature_compressor.1}
  #allocation0 [shape = 'u32[]', space=smem, size = 0x4, offset = 0x4, fixed_abs, tag = 'smem constant byte address 0x4 - core index']
  #allocation1 [shape = 'u32[144,128]{1,0:T(1,128)}', space=vmem, size = 0x12000, scoped, tag = 'internal scratch']
  %s0 = inlined_call_operand.vmem [shape: bf16[16,1024], index: 0, kind: input, shape index: {}]
  %s1 = inlined_call_operand.hbm [shape: bf16[1024,256], index: 1, kind: input, shape index: {}]
  %s2 = inlined_call_operand.vmem [shape: f32[1,256], index: 2, kind: input, shape index: {}]
  %s3 = inlined_call_operand.vmem [shape: f32[16,256], index: 3, kind: output, shape index: {}]
  %s4 = sld [smem:[#allocation0]]
  $region87: #{linear_feature_compressor.1} parent=0
    _
  %s6 = ssub.s32 1, %s4
  %s7 = scalar_select 0, %s6, %s4
  $region1: #{linear_feature_compressor.1} parent=0
    #allocation2 [shape = 'u8[524288]{0}', space=vmem, size = 0x80000, scoped, tag = 'input window, operand 1']
    #allocation3 [shape = 's32[2]{0}', space=sflag, size = 0x8, scoped, tag = 'scoped memory for linear_feature_compressor.1']
    #allocation4 [shape = 'u8[16384]{0}', space=vmem, size = 0x4000, scoped, tag = 'output window, operand 0']
    %8 = vsyncpa [#allocation3], 0
    %s9 = scalar_lea.sflag [#allocation3], 1
    %10 = vsyncpa %s9, 0
    loop: start=0, step=1, limit=4
    $region2: #{linear_feature_compressor.1} parent=1 // loop_pre_header
      _
    $region3: #{linear_feature_compressor.1} parent=1 // loop_header
      %s12 = sphi 0, %s16
      %p13 = scmp.ge.s32.totalorder %s12, 4
      %s19 = sphi 0, %s38
      %s20 = sphi 0, %s34
      %s21 = sphi 0, %s30
      %s22 = sphi 0, %s19
      %s23 = sphi 0, %s20
      %s24 = sphi 0, %s21
      %s25 = sphi 0, %s22
      %s26 = sphi 0, %s23
      %s27 = sphi 0, %s24
      %s43 = sphi 0, %s45
      %s46 = sphi 0, %s43
      %s47 = sphi 0, %s46
      %s63 = sphi 0, %s47
      %s71 = sphi 0, %s73
      %s74 = sphi 0, %s71
      %s75 = sphi 0, %s74
      %s91 = sphi 0, %s75
      %s97 = sphi 0, %s99
      %s100 = sphi 0, %s97
      %s101 = sphi 0, %s100
      %s117 = sphi 0, %s101
      %s125 = sphi 0, %s127
      %s128 = sphi 0, %s125
      %s129 = sphi 0, %s128
      %s145 = sphi 0, %s129
    $region4: #{linear_feature_compressor.1} parent=1 // loop_header_branch
      %15 = sbr.rel (%p13) target = $region8
    $region5: #{linear_feature_compressor.1} parent=1 // loop_body
      %s17 = ssub.s32 %s12, 1
      %s18 = ssub.s32 %s12, 2
      %s28 = sadd.s32 1, %s21
      %p29 = scmp.ge.s32.totalorder %s28, 1
      %s30 = scalar_select %p29, 0, %s28
      %s31 = sadd.s32 1, %s20
      %s32 = scalar_select %p29, %s31, %s20
      %p33 = scmp.ge.s32.totalorder %s32, 2
      %s34 = scalar_select %p33, 0, %s32
      %s35 = sadd.s32 1, %s19
      %s36 = scalar_select %p33, %s35, %s19
      %p37 = scmp.ge.s32.totalorder %s36, 1
      %s38 = scalar_select %p37, 0, %s36
      %s39 = ssub.s32 %s19, %s38
      %s40 = ssub.s32 %s21, %s30
      %s41 = sor.u32 %s39, %s40
      %p42 = scmp.eq.s32.totalorder %s41, 0
      %s44 = sadd.s32 %s43, 1
      %s45 = scalar_select %p42, %s43, %s44
      %p48 = pneg %p42
      %p49 = scmp.eq.s32.totalorder %s12, 1
      %p50 = por %p48, %p49
      %p51 = scmp.ne.s32.totalorder %s43, %s46
      %p52 = scmp.eq.s32.totalorder %s12, 0
      %p53 = por %p51, %p52
      %p54 = scmp.ne.s32.totalorder %s43, %s46
      %p55 = scmp.eq.s32.totalorder %s17, 1
      %p56 = por %p54, %p55
      %p57 = scmp.ne.s32.totalorder %s46, %s47
      %p58 = scmp.eq.s32.totalorder %s17, 0
      %p59 = por %p57, %p58
      %p60 = scmp.ne.s32.totalorder %s46, %s47
      %p61 = scmp.eq.s32.totalorder %s18, 1
      %p62 = por %p60, %p61
      %p64 = scmp.ne.s32.totalorder %s47, %s63
      %p65 = scmp.eq.s32.totalorder %s18, 0
      %p66 = por %p64, %p65
      %s67 = ssub.s32 %s21, %s30
      %s68 = ssub.s32 %s20, %s34
      %s69 = sor.u32 %s67, %s68
      %p70 = scmp.eq.s32.totalorder %s69, 0
      %s72 = sadd.s32 %s71, 1
      %s73 = scalar_select %p70, %s71, %s72
      %p76 = pneg %p70
      %p77 = scmp.eq.s32.totalorder %s12, 1
      %p78 = por %p76, %p77
      %p79 = scmp.ne.s32.totalorder %s71, %s74
      %p80 = scmp.eq.s32.totalorder %s12, 0
      %p81 = por %p79, %p80
      %p82 = scmp.ne.s32.totalorder %s71, %s74
      %p83 = scmp.eq.s32.totalorder %s17, 1
      %p84 = por %p82, %p83
      %p85 = scmp.ne.s32.totalorder %s74, %s75
      %p86 = scmp.eq.s32.totalorder %s17, 0
      %p87 = por %p85, %p86
      %p88 = scmp.ne.s32.totalorder %s74, %s75
      %p89 = scmp.eq.s32.totalorder %s18, 1
      %p90 = por %p88, %p89
      %p92 = scmp.ne.s32.totalorder %s75, %s91
      %p93 = scmp.eq.s32.totalorder %s18, 0
      %p94 = por %p92, %p93
      %s95 = ssub.s32 %s20, %s34
      %p96 = scmp.eq.s32.totalorder %s95, 0
      %s98 = sadd.s32 %s97, 1
      %s99 = scalar_select %p96, %s97, %s98
      %p102 = pneg %p96
      %p103 = scmp.eq.s32.totalorder %s12, 1
      %p104 = por %p102, %p103
      %p105 = scmp.ne.s32.totalorder %s97, %s100
      %p106 = scmp.eq.s32.totalorder %s12, 0
      %p107 = por %p105, %p106
      %p108 = scmp.ne.s32.totalorder %s97, %s100
      %p109 = scmp.eq.s32.totalorder %s17, 1
      %p110 = por %p108, %p109
      %p111 = scmp.ne.s32.totalorder %s100, %s101
      %p112 = scmp.eq.s32.totalorder %s17, 0
      %p113 = por %p111, %p112
      %p114 = scmp.ne.s32.totalorder %s100, %s101
      %p115 = scmp.eq.s32.totalorder %s18, 1
      %p116 = por %p114, %p115
      %p118 = scmp.ne.s32.totalorder %s101, %s117
      %p119 = scmp.eq.s32.totalorder %s18, 0
      %p120 = por %p118, %p119
      %s121 = ssub.s32 %s19, %s38
      %s122 = ssub.s32 %s20, %s34
      %s123 = sor.u32 %s121, %s122
      %p124 = scmp.eq.s32.totalorder %s123, 0
      %s126 = sadd.s32 %s125, 1
      %s127 = scalar_select %p124, %s125, %s126
      %p130 = pneg %p124
      %p131 = scmp.eq.s32.totalorder %s12, 1
      %p132 = por %p130, %p131
      %p133 = scmp.ne.s32.totalorder %s125, %s128
      %p134 = scmp.eq.s32.totalorder %s12, 0
      %p135 = por %p133, %p134
      %p136 = scmp.ne.s32.totalorder %s125, %s128
      %p137 = scmp.eq.s32.totalorder %s17, 1
      %p138 = por %p136, %p137
      %p139 = scmp.ne.s32.totalorder %s128, %s129
      %p140 = scmp.eq.s32.totalorder %s17, 0
      %p141 = por %p139, %p140
      %p142 = scmp.ne.s32.totalorder %s128, %s129
      %p143 = scmp.eq.s32.totalorder %s18, 1
      %p144 = por %p142, %p143
      %p146 = scmp.ne.s32.totalorder %s129, %s145
      %p147 = scmp.eq.s32.totalorder %s18, 0
      %p148 = por %p146, %p147
      %p149 = scmp.le.s32.totalorder 1, %s12
      %p150 = scmp.lt.s32.totalorder %s12, 3
      %p151 = pnand %p149, %p150
      %p152 = pneg %p151
      // Predicated region
      $region9: #{linear_feature_compressor.1} parent=5 // pred_check
        _
      $region10: #{linear_feature_compressor.1} parent=5 // pred_check_branch
        %154 = sbr.rel (%p151) target = $region12
      $region11: #{linear_feature_compressor.1} parent=5 // pred_region
        %s155 = ssub.s32 %s12, 1
        // Predicated region
        $region13: #{linear_feature_compressor.1} parent=11 // pred_check
          %p156 = pneg %p59
        $region14: #{linear_feature_compressor.1} parent=11 // pred_check_branch
          %158 = sbr.rel (%p156) target = $region16
        $region15: #{linear_feature_compressor.1} parent=11 // pred_region
          %s159 = smul.u32 2, %s22
          %s160 = smul.u32 8, %s24
          %p161 = scmp.lt.s32.totalorder %s159, 1
          %s162 = scalar_select %p161, %s159, 1
          %p163 = scmp.lt.s32.totalorder %s160, 7
          %s164 = scalar_select %p163, %s160, 7
          %s165 = smul.addr %s162, 8
          %s166 = sadd.s32 %s164, %s165
          %s167 = smul.addr %s166, 4
          %s168 = scalar_lea.vmem %s0, %s167
          %s169 = smul.u32 2, %s22
          %s170 = smul.u32 8, %s24
        $region16: #{linear_feature_compressor.1} parent=11 // pred_fallthru
          _
      $region12: #{linear_feature_compressor.1} parent=5 // pred_fallthru
        _
      %p171 = scmp.lt.s32.totalorder %s12, 2
      // Predicated region
      $region17: #{linear_feature_compressor.1} parent=5 // pred_check
        %p172 = pneg %p171
      $region18: #{linear_feature_compressor.1} parent=5 // pred_check_branch
        %174 = sbr.rel (%p172) target = $region20
      $region19: #{linear_feature_compressor.1} parent=5 // pred_region
        // Predicated region
        $region21: #{linear_feature_compressor.1} parent=19 // pred_check
          %p175 = pneg %p81
        $region22: #{linear_feature_compressor.1} parent=19 // pred_check_branch
          %177 = sbr.rel (%p175) target = $region24
        $region23: #{linear_feature_compressor.1} parent=19 // pred_region
          %s178 = sand.u32 %s71, 1
          %s179 = scalar_lea.sflag [#allocation3], %s178
          %s180 = sand.u32 %s71, 1
          %s181 = smul.addr %s180, 512
          %s182 = scalar_lea.vmem [#allocation2], %s181
          %s183 = smul.u32 128, %s21
          %s185 = ssub.s32 8192, 8192
          %186 = vsyncadd %s179, %s185
          %s187 = smul.addr %s183, 2
          %s188 = sadd.s32 %s20, %s187
          %s189 = smul.addr %s188, 64
          %s190 = scalar_lea.hbm %s1, %s189
          %s191 = sshll.u32 %s182, 4
          %s192 = int_to_ptr.vmem [resolvable:$true] %s191
          %197 = dma.hbm_to_vmem [thread:$0]  %s190, 8192, %s192, %s179, 128, 64, 4
        $region24: #{linear_feature_compressor.1} parent=19 // pred_fallthru
          _
        // Predicated region
        $region25: #{linear_feature_compressor.1} parent=19 // pred_check
          %p198 = pneg %p107
        $region26: #{linear_feature_compressor.1} parent=19 // pred_check_branch
          %200 = sbr.rel (%p198) target = $region28
        $region27: #{linear_feature_compressor.1} parent=19 // pred_region
          %p201 = scmp.lt.s32.totalorder %s20, 1
          %s202 = scalar_select %p201, %s20, 1
          %s203 = scalar_lea.vmem %s2, %s202
        $region28: #{linear_feature_compressor.1} parent=19 // pred_fallthru
          _
      $region20: #{linear_feature_compressor.1} parent=5 // pred_fallthru
        _
      %p204 = scmp.le.s32.totalorder 1, %s12
      %p205 = scmp.lt.s32.totalorder %s12, 3
      %p206 = pnand %p204, %p205
      %p207 = pneg %p206
      // Predicated region
      $region29: #{linear_feature_compressor.1} parent=5 // pred_check
        _
      $region30: #{linear_feature_compressor.1} parent=5 // pred_check_branch
        %209 = sbr.rel (%p206) target = $region32
      $region31: #{linear_feature_compressor.1} parent=5 // pred_region
        %s210 = ssub.s32 %s12, 1
        %s211 = sand.u32 %s74, 1
        %s212 = scalar_lea.sflag [#allocation3], %s211
        %s213 = sand.u32 %s74, 1
        %s214 = smul.addr %s213, 512
        %s215 = scalar_lea.vmem [#allocation2], %s214
        // Predicated region
        $region33: #{linear_feature_compressor.1} parent=31 // pred_check
          %p216 = pneg %p87
        $region34: #{linear_feature_compressor.1} parent=31 // pred_check_branch
          %218 = sbr.rel (%p216) target = $region36
        $region35: #{linear_feature_compressor.1} parent=31 // pred_region
          %219 = dma.done %s212, 8192
        $region36: #{linear_feature_compressor.1} parent=31 // pred_fallthru
          _
        %s220 = smul.u32 2, %s22
        %s221 = smul.u32 8, %s24
        %p222 = scmp.lt.s32.totalorder %s220, 1
        %s223 = scalar_select %p222, %s220, 1
        %p224 = scmp.lt.s32.totalorder %s221, 7
        %s225 = scalar_select %p224, %s221, 7
        %s226 = smul.addr %s223, 8
        %s227 = sadd.s32 %s225, %s226
        %s228 = smul.addr %s227, 4
        %s229 = scalar_lea.vmem %s0, %s228
        %p230 = pneg %p59
        %p231 = pneg %p56
        %s232 = sand.u32 %s74, 1
        %s233 = scalar_lea.sflag [#allocation3], %s232
        %s234 = sand.u32 %s74, 1
        %s235 = smul.addr %s234, 512
        %s236 = scalar_lea.vmem [#allocation2], %s235
        %p237 = pneg %p87
        %p238 = pneg %p84
        %p239 = scmp.lt.s32.totalorder %s23, 1
        %s240 = scalar_select %p239, %s23, 1
        %s241 = scalar_lea.vmem %s2, %s240
        %p242 = pneg %p113
        %p243 = pneg %p110
        %p244 = pneg %p141
        %p245 = pneg %p138
        %s246 = sand.u32 %s128, 1
        %s247 = sand.u32 %s128, 1
        %s248 = smul.addr %s247, 16
        %s249 = scalar_lea.vmem [#allocation4], %s248
        %s250 = smul.u32 2, %s22
        %s251 = smul.u32 8, %s24
        %p252 = scmp.lt.s32.totalorder %s250, 1
        %s253 = scalar_select %p252, %s250, 1
        %p254 = scmp.lt.s32.totalorder %s251, 7
        %s255 = scalar_select %p254, %s251, 7
        %s256 = smul.addr %s253, 8
        %s257 = sadd.s32 %s255, %s256
        %s258 = smul.addr %s257, 4
        %s259 = scalar_lea.vmem %s0, %s258
        %s260 = smul.u32 2, %s22
        %s261 = smul.u32 8, %s24
        %s262 = smul.u32 128, %s24
        %p263 = scmp.lt.s32.totalorder %s23, 1
        %s264 = scalar_select %p263, %s23, 1
        %s265 = scalar_lea.vmem %s2, %s264
        %s266 = smul.u32 2, %s22
        %p268 = scmp.eq.s32.totalorder %s24, 0
        // Predicated region
        $region37: #{linear_feature_compressor.1} parent=31 // pred_check
          %p269 = pneg %p268
        $region38: #{linear_feature_compressor.1} parent=31 // pred_check_branch
          %271 = sbr.rel (%p269) target = $region40
        $region39: #{linear_feature_compressor.1} parent=31 // pred_region
          %v272 = vld [vmem:[%s265] sm:$0x1]
          %v274 = vlaneseq
          %v275 = vshrl.u32 %v274, 7
          %v276 = vsub.s32 0, %v275
          %v277 = vrot.slane %v272, %v276
          %279 = vst [vmem:[%s249] sm:$0xff] %v277
          %280 = vst [vmem:[%s249 + $0x8] sm:$0xff] %v277
        $region40: #{linear_feature_compressor.1} parent=31 // pred_fallthru
          _
        %v281 = vld [vmem:[%s249] sm:$0xff]
        %v282 = vld [vmem:[%s249 + $0x8] sm:$0xff]
        %v283 = vld [vmem:[%s259] sm:$0xff]
        %v284 = vld [vmem:[%s259 + $0x8] sm:$0xff]
        %v285 = vld [vmem:[%s259 + $0x10] sm:$0xff]
        %v286 = vld [vmem:[%s259 + $0x18] sm:$0xff]
        %v287 = vld [vmem:[%s259 + $0x20] sm:$0xff]
        %v288 = vld [vmem:[%s259 + $0x28] sm:$0xff]
        %v289 = vld [vmem:[%s259 + $0x30] sm:$0xff]
        %v290 = vld [vmem:[%s259 + $0x38] sm:$0xff]
        %v291 = vld [vmem:[%s215] sm:$0xf]
        %v292 = vld [vmem:[%s215 + $0x4] sm:$0xf]
        %v293 = vld [vmem:[%s215 + $0x8] sm:$0xf]
        %v294 = vld [vmem:[%s215 + $0xc] sm:$0xf]
        %v295 = vld [vmem:[%s215 + $0x10] sm:$0xf]
        %v296 = vld [vmem:[%s215 + $0x14] sm:$0xf]
        %v297 = vld [vmem:[%s215 + $0x18] sm:$0xf]
        %v298 = vld [vmem:[%s215 + $0x1c] sm:$0xf]
        %v299 = vld [vmem:[%s215 + $0x20] sm:$0xf]
        %v300 = vld [vmem:[%s215 + $0x24] sm:$0xf]
        %v301 = vld [vmem:[%s215 + $0x28] sm:$0xf]
        %v302 = vld [vmem:[%s215 + $0x2c] sm:$0xf]
        %v303 = vld [vmem:[%s215 + $0x30] sm:$0xf]
        %v304 = vld [vmem:[%s215 + $0x34] sm:$0xf]
        %v305 = vld [vmem:[%s215 + $0x38] sm:$0xf]
        %v306 = vld [vmem:[%s215 + $0x3c] sm:$0xf]
        %v307 = vld [vmem:[%s215 + $0x40] sm:$0xf]
        %v308 = vld [vmem:[%s215 + $0x44] sm:$0xf]
        %v309 = vld [vmem:[%s215 + $0x48] sm:$0xf]
        %v310 = vld [vmem:[%s215 + $0x4c] sm:$0xf]
        %v311 = vld [vmem:[%s215 + $0x50] sm:$0xf]
        %v312 = vld [vmem:[%s215 + $0x54] sm:$0xf]
        %v313 = vld [vmem:[%s215 + $0x58] sm:$0xf]
        %v314 = vld [vmem:[%s215 + $0x5c] sm:$0xf]
        %v315 = vld [vmem:[%s215 + $0x60] sm:$0xf]
        %v316 = vld [vmem:[%s215 + $0x64] sm:$0xf]
        %v317 = vld [vmem:[%s215 + $0x68] sm:$0xf]
        %v318 = vld [vmem:[%s215 + $0x6c] sm:$0xf]
        %v319 = vld [vmem:[%s215 + $0x70] sm:$0xf]
        %v320 = vld [vmem:[%s215 + $0x74] sm:$0xf]
        %v321 = vld [vmem:[%s215 + $0x78] sm:$0xf]
        %v322 = vld [vmem:[%s215 + $0x7c] sm:$0xf]
        %v323 = vld [vmem:[%s215 + $0x80] sm:$0xf]
        %v324 = vld [vmem:[%s215 + $0x84] sm:$0xf]
        %v325 = vld [vmem:[%s215 + $0x88] sm:$0xf]
        %v326 = vld [vmem:[%s215 + $0x8c] sm:$0xf]
        %v327 = vld [vmem:[%s215 + $0x90] sm:$0xf]
        %v328 = vld [vmem:[%s215 + $0x94] sm:$0xf]
        %v329 = vld [vmem:[%s215 + $0x98] sm:$0xf]
        %v330 = vld [vmem:[%s215 + $0x9c] sm:$0xf]
        %v331 = vld [vmem:[%s215 + $0xa0] sm:$0xf]
        %v332 = vld [vmem:[%s215 + $0xa4] sm:$0xf]
        %v333 = vld [vmem:[%s215 + $0xa8] sm:$0xf]
        %v334 = vld [vmem:[%s215 + $0xac] sm:$0xf]
        %v335 = vld [vmem:[%s215 + $0xb0] sm:$0xf]
        %v336 = vld [vmem:[%s215 + $0xb4] sm:$0xf]
        %v337 = vld [vmem:[%s215 + $0xb8] sm:$0xf]
        %v338 = vld [vmem:[%s215 + $0xbc] sm:$0xf]
        %v339 = vld [vmem:[%s215 + $0xc0] sm:$0xf]
        %v340 = vld [vmem:[%s215 + $0xc4] sm:$0xf]
        %v341 = vld [vmem:[%s215 + $0xc8] sm:$0xf]
        %v342 = vld [vmem:[%s215 + $0xcc] sm:$0xf]
        %v343 = vld [vmem:[%s215 + $0xd0] sm:$0xf]
        %v344 = vld [vmem:[%s215 + $0xd4] sm:$0xf]
        %v345 = vld [vmem:[%s215 + $0xd8] sm:$0xf]
        %v346 = vld [vmem:[%s215 + $0xdc] sm:$0xf]
        %v347 = vld [vmem:[%s215 + $0xe0] sm:$0xf]
        %v348 = vld [vmem:[%s215 + $0xe4] sm:$0xf]
        %v349 = vld [vmem:[%s215 + $0xe8] sm:$0xf]
        %v350 = vld [vmem:[%s215 + $0xec] sm:$0xf]
        %v351 = vld [vmem:[%s215 + $0xf0] sm:$0xf]
        %v352 = vld [vmem:[%s215 + $0xf4] sm:$0xf]
        %v353 = vld [vmem:[%s215 + $0xf8] sm:$0xf]
        %v354 = vld [vmem:[%s215 + $0xfc] sm:$0xf]
        %v355 = vld [vmem:[%s215 + $0x100] sm:$0xf]
        %v356 = vld [vmem:[%s215 + $0x104] sm:$0xf]
        %v357 = vld [vmem:[%s215 + $0x108] sm:$0xf]
        %v358 = vld [vmem:[%s215 + $0x10c] sm:$0xf]
        %v359 = vld [vmem:[%s215 + $0x110] sm:$0xf]
        %v360 = vld [vmem:[%s215 + $0x114] sm:$0xf]
        %v361 = vld [vmem:[%s215 + $0x118] sm:$0xf]
        %v362 = vld [vmem:[%s215 + $0x11c] sm:$0xf]
        %v363 = vld [vmem:[%s215 + $0x120] sm:$0xf]
        %v364 = vld [vmem:[%s215 + $0x124] sm:$0xf]
        %v365 = vld [vmem:[%s215 + $0x128] sm:$0xf]
        %v366 = vld [vmem:[%s215 + $0x12c] sm:$0xf]
        %v367 = vld [vmem:[%s215 + $0x130] sm:$0xf]
        %v368 = vld [vmem:[%s215 + $0x134] sm:$0xf]
        %v369 = vld [vmem:[%s215 + $0x138] sm:$0xf]
        %v370 = vld [vmem:[%s215 + $0x13c] sm:$0xf]
        %v371 = vld [vmem:[%s215 + $0x140] sm:$0xf]
        %v372 = vld [vmem:[%s215 + $0x144] sm:$0xf]
        %v373 = vld [vmem:[%s215 + $0x148] sm:$0xf]
        %v374 = vld [vmem:[%s215 + $0x14c] sm:$0xf]
        %v375 = vld [vmem:[%s215 + $0x150] sm:$0xf]
        %v376 = vld [vmem:[%s215 + $0x154] sm:$0xf]
        %v377 = vld [vmem:[%s215 + $0x158] sm:$0xf]
        %v378 = vld [vmem:[%s215 + $0x15c] sm:$0xf]
        %v379 = vld [vmem:[%s215 + $0x160] sm:$0xf]
        %v380 = vld [vmem:[%s215 + $0x164] sm:$0xf]
        %v381 = vld [vmem:[%s215 + $0x168] sm:$0xf]
        %v382 = vld [vmem:[%s215 + $0x16c] sm:$0xf]
        %v383 = vld [vmem:[%s215 + $0x170] sm:$0xf]
        %v384 = vld [vmem:[%s215 + $0x174] sm:$0xf]
        %v385 = vld [vmem:[%s215 + $0x178] sm:$0xf]
        %v386 = vld [vmem:[%s215 + $0x17c] sm:$0xf]
        %v387 = vld [vmem:[%s215 + $0x180] sm:$0xf]
        %v388 = vld [vmem:[%s215 + $0x184] sm:$0xf]
        %v389 = vld [vmem:[%s215 + $0x188] sm:$0xf]
        %v390 = vld [vmem:[%s215 + $0x18c] sm:$0xf]
        %v391 = vld [vmem:[%s215 + $0x190] sm:$0xf]
        %v392 = vld [vmem:[%s215 + $0x194] sm:$0xf]
        %v393 = vld [vmem:[%s215 + $0x198] sm:$0xf]
        %v394 = vld [vmem:[%s215 + $0x19c] sm:$0xf]
        %v395 = vld [vmem:[%s215 + $0x1a0] sm:$0xf]
        %v396 = vld [vmem:[%s215 + $0x1a4] sm:$0xf]
        %v397 = vld [vmem:[%s215 + $0x1a8] sm:$0xf]
        %v398 = vld [vmem:[%s215 + $0x1ac] sm:$0xf]
        %v399 = vld [vmem:[%s215 + $0x1b0] sm:$0xf]
        %v400 = vld [vmem:[%s215 + $0x1b4] sm:$0xf]
        %v401 = vld [vmem:[%s215 + $0x1b8] sm:$0xf]
        %v402 = vld [vmem:[%s215 + $0x1bc] sm:$0xf]
        %v403 = vld [vmem:[%s215 + $0x1c0] sm:$0xf]
        %v404 = vld [vmem:[%s215 + $0x1c4] sm:$0xf]
        %v405 = vld [vmem:[%s215 + $0x1c8] sm:$0xf]
        %v406 = vld [vmem:[%s215 + $0x1cc] sm:$0xf]
        %v407 = vld [vmem:[%s215 + $0x1d0] sm:$0xf]
        %v408 = vld [vmem:[%s215 + $0x1d4] sm:$0xf]
        %v409 = vld [vmem:[%s215 + $0x1d8] sm:$0xf]
        %v410 = vld [vmem:[%s215 + $0x1dc] sm:$0xf]
        %v411 = vld [vmem:[%s215 + $0x1e0] sm:$0xf]
        %v412 = vld [vmem:[%s215 + $0x1e4] sm:$0xf]
        %v413 = vld [vmem:[%s215 + $0x1e8] sm:$0xf]
        %v414 = vld [vmem:[%s215 + $0x1ec] sm:$0xf]
        %v415 = vld [vmem:[%s215 + $0x1f0] sm:$0xf]
        %v416 = vld [vmem:[%s215 + $0x1f4] sm:$0xf]
        %v417 = vld [vmem:[%s215 + $0x1f8] sm:$0xf]
        %v418 = vld [vmem:[%s215 + $0x1fc] sm:$0xf]
        %v427 = vunpack.c.l.b16 %v283
        %v428 = vunpack.c.h.b16 %v283
        %v429 = vunpack.c.l.b16 %v284
        %v430 = vunpack.c.h.b16 %v284
        %v431 = vunpack.c.l.b16 %v285
        %v432 = vunpack.c.h.b16 %v285
        %v433 = vunpack.c.l.b16 %v286
        %v434 = vunpack.c.h.b16 %v286
        %v435 = vunpack.c.l.b16 %v287
        %v436 = vunpack.c.h.b16 %v287
        %v437 = vunpack.c.l.b16 %v288
        %v438 = vunpack.c.h.b16 %v288
        %v439 = vunpack.c.l.b16 %v289
        %v440 = vunpack.c.h.b16 %v289
        %v441 = vunpack.c.l.b16 %v290
        %v442 = vunpack.c.h.b16 %v290
        %v443 = vpack.c.b16 %v435, %v427
        %v444 = vpack.c.b16 %v436, %v428
        %v445 = vpack.c.b16 %v437, %v429
        %v446 = vpack.c.b16 %v438, %v430
        %v447 = vpack.c.b16 %v439, %v431
        %v448 = vpack.c.b16 %v440, %v432
        %v449 = vpack.c.b16 %v441, %v433
        %v450 = vpack.c.b16 %v442, %v434
        %v587 = vunpack.c.l.b16 %v291
        %v588 = vunpack.c.l.b16 %v292
        %v589 = vunpack.c.l.b16 %v293
        %v590 = vunpack.c.l.b16 %v294
        %v591 = vunpack.c.l.b16 %v295
        %v592 = vunpack.c.l.b16 %v296
        %v593 = vunpack.c.l.b16 %v297
        %v594 = vunpack.c.l.b16 %v298
        %v595 = vunpack.c.l.b16 %v299
        %v596 = vunpack.c.l.b16 %v300
        %v597 = vunpack.c.l.b16 %v301
        %v598 = vunpack.c.l.b16 %v302
        %v599 = vunpack.c.l.b16 %v303
        %v600 = vunpack.c.l.b16 %v304
        %v601 = vunpack.c.l.b16 %v305
        %v602 = vunpack.c.l.b16 %v306
        %v603 = vunpack.c.l.b16 %v307
        %v604 = vunpack.c.l.b16 %v308
        %v605 = vunpack.c.l.b16 %v309
        %v606 = vunpack.c.l.b16 %v310
        %v607 = vunpack.c.l.b16 %v311
        %v608 = vunpack.c.l.b16 %v312
        %v609 = vunpack.c.l.b16 %v313
        %v610 = vunpack.c.l.b16 %v314
        %v611 = vunpack.c.l.b16 %v315
        %v612 = vunpack.c.l.b16 %v316
        %v613 = vunpack.c.l.b16 %v317
        %v614 = vunpack.c.l.b16 %v318
        %v615 = vunpack.c.l.b16 %v319
        %v616 = vunpack.c.l.b16 %v320
        %v617 = vunpack.c.l.b16 %v321
        %v618 = vunpack.c.l.b16 %v322
        %v619 = vunpack.c.l.b16 %v323
        %v620 = vunpack.c.l.b16 %v324
        %v621 = vunpack.c.l.b16 %v325
        %v622 = vunpack.c.l.b16 %v326
        %v623 = vunpack.c.l.b16 %v327
        %v624 = vunpack.c.l.b16 %v328
        %v625 = vunpack.c.l.b16 %v329
        %v626 = vunpack.c.l.b16 %v330
        %v627 = vunpack.c.l.b16 %v331
        %v628 = vunpack.c.l.b16 %v332
        %v629 = vunpack.c.l.b16 %v333
        %v630 = vunpack.c.l.b16 %v334
        %v631 = vunpack.c.l.b16 %v335
        %v632 = vunpack.c.l.b16 %v336
        %v633 = vunpack.c.l.b16 %v337
        %v634 = vunpack.c.l.b16 %v338
        %v635 = vunpack.c.l.b16 %v339
        %v636 = vunpack.c.l.b16 %v340
        %v637 = vunpack.c.l.b16 %v341
        %v638 = vunpack.c.l.b16 %v342
        %v639 = vunpack.c.l.b16 %v343
        %v640 = vunpack.c.l.b16 %v344
        %v641 = vunpack.c.l.b16 %v345
        %v642 = vunpack.c.l.b16 %v346
        %v643 = vunpack.c.l.b16 %v347
        %v644 = vunpack.c.l.b16 %v348
        %v645 = vunpack.c.l.b16 %v349
        %v646 = vunpack.c.l.b16 %v350
        %v647 = vunpack.c.l.b16 %v351
        %v648 = vunpack.c.l.b16 %v352
        %v649 = vunpack.c.l.b16 %v353
        %v650 = vunpack.c.l.b16 %v354
        %v651 = vunpack.c.l.b16 %v355
        %v652 = vunpack.c.l.b16 %v356
        %v653 = vunpack.c.l.b16 %v357
        %v654 = vunpack.c.l.b16 %v358
        %v655 = vunpack.c.l.b16 %v359
        %v656 = vunpack.c.l.b16 %v360
        %v657 = vunpack.c.l.b16 %v361
        %v658 = vunpack.c.l.b16 %v362
        %v659 = vunpack.c.l.b16 %v363
        %v660 = vunpack.c.l.b16 %v364
        %v661 = vunpack.c.l.b16 %v365
        %v662 = vunpack.c.l.b16 %v366
        %v663 = vunpack.c.l.b16 %v367
        %v664 = vunpack.c.l.b16 %v368
        %v665 = vunpack.c.l.b16 %v369
        %v666 = vunpack.c.l.b16 %v370
        %v667 = vunpack.c.l.b16 %v371
        %v668 = vunpack.c.l.b16 %v372
        %v669 = vunpack.c.l.b16 %v373
        %v670 = vunpack.c.l.b16 %v374
        %v671 = vunpack.c.l.b16 %v375
        %v672 = vunpack.c.l.b16 %v376
        %v673 = vunpack.c.l.b16 %v377
        %v674 = vunpack.c.l.b16 %v378
        %v675 = vunpack.c.l.b16 %v379
        %v676 = vunpack.c.l.b16 %v380
        %v677 = vunpack.c.l.b16 %v381
        %v678 = vunpack.c.l.b16 %v382
        %v679 = vunpack.c.l.b16 %v383
        %v680 = vunpack.c.l.b16 %v384
        %v681 = vunpack.c.l.b16 %v385
        %v682 = vunpack.c.l.b16 %v386
        %v683 = vunpack.c.l.b16 %v387
        %v684 = vunpack.c.l.b16 %v388
        %v685 = vunpack.c.l.b16 %v389
        %v686 = vunpack.c.l.b16 %v390
        %v687 = vunpack.c.l.b16 %v391
        %v688 = vunpack.c.l.b16 %v392
        %v689 = vunpack.c.l.b16 %v393
        %v690 = vunpack.c.l.b16 %v394
        %v691 = vunpack.c.l.b16 %v395
        %v692 = vunpack.c.l.b16 %v396
        %v693 = vunpack.c.l.b16 %v397
        %v694 = vunpack.c.l.b16 %v398
        %v695 = vunpack.c.l.b16 %v399
        %v696 = vunpack.c.l.b16 %v400
        %v697 = vunpack.c.l.b16 %v401
        %v698 = vunpack.c.l.b16 %v402
        %v699 = vunpack.c.l.b16 %v403
        %v700 = vunpack.c.l.b16 %v404
        %v701 = vunpack.c.l.b16 %v405
        %v702 = vunpack.c.l.b16 %v406
        %v703 = vunpack.c.l.b16 %v407
        %v704 = vunpack.c.l.b16 %v408
        %v705 = vunpack.c.l.b16 %v409
        %v706 = vunpack.c.l.b16 %v410
        %v707 = vunpack.c.l.b16 %v411
        %v708 = vunpack.c.l.b16 %v412
        %v709 = vunpack.c.l.b16 %v413
        %v710 = vunpack.c.l.b16 %v414
        %v711 = vunpack.c.l.b16 %v415
        %v712 = vunpack.c.l.b16 %v416
        %v713 = vunpack.c.l.b16 %v417
        %v714 = vunpack.c.l.b16 %v418
        %v715 = vpack.c.b16 %v588, %v587
        %v716 = vpack.c.b16 %v590, %v589
        %v717 = vpack.c.b16 %v592, %v591
        %v718 = vpack.c.b16 %v594, %v593
        %v719 = vpack.c.b16 %v596, %v595
        %v720 = vpack.c.b16 %v598, %v597
        %v721 = vpack.c.b16 %v600, %v599
        %v722 = vpack.c.b16 %v602, %v601
        %v723 = vpack.c.b16 %v604, %v603
        %v724 = vpack.c.b16 %v606, %v605
        %v725 = vpack.c.b16 %v608, %v607
        %v726 = vpack.c.b16 %v610, %v609
        %v727 = vpack.c.b16 %v612, %v611
        %v728 = vpack.c.b16 %v614, %v613
        %v729 = vpack.c.b16 %v616, %v615
        %v730 = vpack.c.b16 %v618, %v617
        %v731 = vpack.c.b16 %v620, %v619
        %v732 = vpack.c.b16 %v622, %v621
        %v733 = vpack.c.b16 %v624, %v623
        %v734 = vpack.c.b16 %v626, %v625
        %v735 = vpack.c.b16 %v628, %v627
        %v736 = vpack.c.b16 %v630, %v629
        %v737 = vpack.c.b16 %v632, %v631
        %v738 = vpack.c.b16 %v634, %v633
        %v739 = vpack.c.b16 %v636, %v635
        %v740 = vpack.c.b16 %v638, %v637
        %v741 = vpack.c.b16 %v640, %v639
        %v742 = vpack.c.b16 %v642, %v641
        %v743 = vpack.c.b16 %v644, %v643
        %v744 = vpack.c.b16 %v646, %v645
        %v745 = vpack.c.b16 %v648, %v647
        %v746 = vpack.c.b16 %v650, %v649
        %v747 = vpack.c.b16 %v652, %v651
        %v748 = vpack.c.b16 %v654, %v653
        %v749 = vpack.c.b16 %v656, %v655
        %v750 = vpack.c.b16 %v658, %v657
        %v751 = vpack.c.b16 %v660, %v659
        %v752 = vpack.c.b16 %v662, %v661
        %v753 = vpack.c.b16 %v664, %v663
        %v754 = vpack.c.b16 %v666, %v665
        %v755 = vpack.c.b16 %v668, %v667
        %v756 = vpack.c.b16 %v670, %v669
        %v757 = vpack.c.b16 %v672, %v671
        %v758 = vpack.c.b16 %v674, %v673
        %v759 = vpack.c.b16 %v676, %v675
        %v760 = vpack.c.b16 %v678, %v677
        %v761 = vpack.c.b16 %v680, %v679
        %v762 = vpack.c.b16 %v682, %v681
        %v763 = vpack.c.b16 %v684, %v683
        %v764 = vpack.c.b16 %v686, %v685
        %v765 = vpack.c.b16 %v688, %v687
        %v766 = vpack.c.b16 %v690, %v689
        %v767 = vpack.c.b16 %v692, %v691
        %v768 = vpack.c.b16 %v694, %v693
        %v769 = vpack.c.b16 %v696, %v695
        %v770 = vpack.c.b16 %v698, %v697
        %v771 = vpack.c.b16 %v700, %v699
        %v772 = vpack.c.b16 %v702, %v701
        %v773 = vpack.c.b16 %v704, %v703
        %v774 = vpack.c.b16 %v706, %v705
        %v775 = vpack.c.b16 %v708, %v707
        %v776 = vpack.c.b16 %v710, %v709
        %v777 = vpack.c.b16 %v712, %v711
        %v778 = vpack.c.b16 %v714, %v713
        %843 = vmatprep.subr.bf16.mxu0 0
        %844 = vmatpush1.bf16.msra.mxu0 %v715
        %845 = vmatprep.subr.bf16.mxu0 0
        %846 = vmatpush1.bf16.msra.mxu0 %v716
        %847 = vmatprep.subr.bf16.mxu0 0
        %848 = vmatpush1.bf16.msra.mxu0 %v717
        %849 = vmatprep.subr.bf16.mxu0 0
        %850 = vmatpush1.bf16.msra.mxu0 %v718
        %851 = vmatprep.subr.bf16.mxu0 0
        %852 = vmatpush1.bf16.msra.mxu0 %v719
        %853 = vmatprep.subr.bf16.mxu0 0
        %854 = vmatpush1.bf16.msra.mxu0 %v720
        %855 = vmatprep.subr.bf16.mxu0 0
        %856 = vmatpush1.bf16.msra.mxu0 %v721
        %857 = vmatprep.subr.bf16.mxu0 0
        %858 = vmatpush1.bf16.msra.mxu0 %v722
        %859 = vmatprep.subr.bf16.mxu0 0
        %860 = vmatpush1.bf16.msra.mxu0 %v723
        %861 = vmatprep.subr.bf16.mxu0 0
        %862 = vmatpush1.bf16.msra.mxu0 %v724
        %863 = vmatprep.subr.bf16.mxu0 0
        %864 = vmatpush1.bf16.msra.mxu0 %v725
        %865 = vmatprep.subr.bf16.mxu0 0
        %866 = vmatpush1.bf16.msra.mxu0 %v726
        %867 = vmatprep.subr.bf16.mxu0 0
        %868 = vmatpush1.bf16.msra.mxu0 %v727
        %869 = vmatprep.subr.bf16.mxu0 0
        %870 = vmatpush1.bf16.msra.mxu0 %v728
        %871 = vmatprep.subr.bf16.mxu0 0
        %872 = vmatpush1.bf16.msra.mxu0 %v729
        %873 = vmatprep.subr.bf16.mxu0 0
        %874 = vmatpush1.bf16.msra.mxu0 %v730
        %875 = vmatprep.mubr.bf16.mxu0 %v444
        %876 = vmatmul.mubr.bf16.gmra.mrb[0].mxu0 %v443
        %v877 = vpop.f32.mrb[0].mxu0
        %v878 = vadd.f32 0.0, %v877
        %v879 = vpop.f32.mrb[0].mxu0
        %v880 = vpop.f32.mrb[0].mxu0
        %v881 = vadd.f32 0.0, %v880
        %v882 = vpop.f32.mrb[0].mxu0
        %883 = vdwg.mxu0
        %884 = vmatprep.subr.bf16.mxu0 0
        %885 = vmatpush1.bf16.msra.mxu0 %v731
        %886 = vmatprep.subr.bf16.mxu0 0
        %887 = vmatpush1.bf16.msra.mxu0 %v732
        %888 = vmatprep.subr.bf16.mxu0 0
        %889 = vmatpush1.bf16.msra.mxu0 %v733
        %890 = vmatprep.subr.bf16.mxu0 0
        %891 = vmatpush1.bf16.msra.mxu0 %v734
        %892 = vmatprep.subr.bf16.mxu0 0
        %893 = vmatpush1.bf16.msra.mxu0 %v735
        %894 = vmatprep.subr.bf16.mxu0 0
        %895 = vmatpush1.bf16.msra.mxu0 %v736
        %896 = vmatprep.subr.bf16.mxu0 0
        %897 = vmatpush1.bf16.msra.mxu0 %v737
        %898 = vmatprep.subr.bf16.mxu0 0
        %899 = vmatpush1.bf16.msra.mxu0 %v738
        %900 = vmatprep.subr.bf16.mxu0 0
        %901 = vmatpush1.bf16.msra.mxu0 %v739
        %902 = vmatprep.subr.bf16.mxu0 0
        %903 = vmatpush1.bf16.msra.mxu0 %v740
        %904 = vmatprep.subr.bf16.mxu0 0
        %905 = vmatpush1.bf16.msra.mxu0 %v741
        %906 = vmatprep.subr.bf16.mxu0 0
        %907 = vmatpush1.bf16.msra.mxu0 %v742
        %908 = vmatprep.subr.bf16.mxu0 0
        %909 = vmatpush1.bf16.msra.mxu0 %v743
        %910 = vmatprep.subr.bf16.mxu0 0
        %911 = vmatpush1.bf16.msra.mxu0 %v744
        %912 = vmatprep.subr.bf16.mxu0 0
        %913 = vmatpush1.bf16.msra.mxu0 %v745
        %914 = vmatprep.subr.bf16.mxu0 0
        %915 = vmatpush1.bf16.msra.mxu0 %v746
        %916 = vmatprep.mubr.bf16.mxu0 %v446
        %917 = vmatmul.mubr.bf16.gmra.mrb[0].mxu0 %v445
        %v918 = vpop.f32.mrb[0].mxu0
        %v919 = vadd.f32 %v878, %v918
        %v920 = vpop.f32.mrb[0].mxu0
        %v921 = vpop.f32.mrb[0].mxu0
        %v922 = vadd.f32 %v881, %v921
        %v923 = vpop.f32.mrb[0].mxu0
        %924 = vdwg.mxu0
        %925 = vmatprep.subr.bf16.mxu0 0
        %926 = vmatpush1.bf16.msra.mxu0 %v747
        %927 = vmatprep.subr.bf16.mxu0 0
        %928 = vmatpush1.bf16.msra.mxu0 %v748
        %929 = vmatprep.subr.bf16.mxu0 0
        %930 = vmatpush1.bf16.msra.mxu0 %v749
        %931 = vmatprep.subr.bf16.mxu0 0
        %932 = vmatpush1.bf16.msra.mxu0 %v750
        %933 = vmatprep.subr.bf16.mxu0 0
        %934 = vmatpush1.bf16.msra.mxu0 %v751
        %935 = vmatprep.subr.bf16.mxu0 0
        %936 = vmatpush1.bf16.msra.mxu0 %v752
        %937 = vmatprep.subr.bf16.mxu0 0
        %938 = vmatpush1.bf16.msra.mxu0 %v753
        %939 = vmatprep.subr.bf16.mxu0 0
        %940 = vmatpush1.bf16.msra.mxu0 %v754
        %941 = vmatprep.subr.bf16.mxu0 0
        %942 = vmatpush1.bf16.msra.mxu0 %v755
        %943 = vmatprep.subr.bf16.mxu0 0
        %944 = vmatpush1.bf16.msra.mxu0 %v756
        %945 = vmatprep.subr.bf16.mxu0 0
        %946 = vmatpush1.bf16.msra.mxu0 %v757
        %947 = vmatprep.subr.bf16.mxu0 0
        %948 = vmatpush1.bf16.msra.mxu0 %v758
        %949 = vmatprep.subr.bf16.mxu0 0
        %950 = vmatpush1.bf16.msra.mxu0 %v759
        %951 = vmatprep.subr.bf16.mxu0 0
        %952 = vmatpush1.bf16.msra.mxu0 %v760
        %953 = vmatprep.subr.bf16.mxu0 0
        %954 = vmatpush1.bf16.msra.mxu0 %v761
        %955 = vmatprep.subr.bf16.mxu0 0
        %956 = vmatpush1.bf16.msra.mxu0 %v762
        %957 = vmatprep.mubr.bf16.mxu0 %v448
        %958 = vmatmul.mubr.bf16.gmra.mrb[0].mxu0 %v447
        %v959 = vpop.f32.mrb[0].mxu0
        %v960 = vadd.f32 %v919, %v959
        %v961 = vpop.f32.mrb[0].mxu0
        %v962 = vpop.f32.mrb[0].mxu0
        %v963 = vadd.f32 %v922, %v962
        %v964 = vpop.f32.mrb[0].mxu0
        %965 = vdwg.mxu0
        %966 = vmatprep.subr.bf16.mxu0 0
        %967 = vmatpush1.bf16.msra.mxu0 %v763
        %968 = vmatprep.subr.bf16.mxu0 0
        %969 = vmatpush1.bf16.msra.mxu0 %v764
        %970 = vmatprep.subr.bf16.mxu0 0
        %971 = vmatpush1.bf16.msra.mxu0 %v765
        %972 = vmatprep.subr.bf16.mxu0 0
        %973 = vmatpush1.bf16.msra.mxu0 %v766
        %974 = vmatprep.subr.bf16.mxu0 0
        %975 = vmatpush1.bf16.msra.mxu0 %v767
        %976 = vmatprep.subr.bf16.mxu0 0
        %977 = vmatpush1.bf16.msra.mxu0 %v768
        %978 = vmatprep.subr.bf16.mxu0 0
        %979 = vmatpush1.bf16.msra.mxu0 %v769
        %980 = vmatprep.subr.bf16.mxu0 0
        %981 = vmatpush1.bf16.msra.mxu0 %v770
        %982 = vmatprep.subr.bf16.mxu0 0
        %983 = vmatpush1.bf16.msra.mxu0 %v771
        %984 = vmatprep.subr.bf16.mxu0 0
        %985 = vmatpush1.bf16.msra.mxu0 %v772
        %986 = vmatprep.subr.bf16.mxu0 0
        %987 = vmatpush1.bf16.msra.mxu0 %v773
        %988 = vmatprep.subr.bf16.mxu0 0
        %989 = vmatpush1.bf16.msra.mxu0 %v774
        %990 = vmatprep.subr.bf16.mxu0 0
        %991 = vmatpush1.bf16.msra.mxu0 %v775
        %992 = vmatprep.subr.bf16.mxu0 0
        %993 = vmatpush1.bf16.msra.mxu0 %v776
        %994 = vmatprep.subr.bf16.mxu0 0
        %995 = vmatpush1.bf16.msra.mxu0 %v777
        %996 = vmatprep.subr.bf16.mxu0 0
        %997 = vmatpush1.bf16.msra.mxu0 %v778
        %998 = vmatprep.mubr.bf16.mxu0 %v450
        %999 = vmatmul.mubr.bf16.gmra.mrb[0].mxu0 %v449
        %v1000 = vpop.f32.mrb[0].mxu0
        %v1001 = vadd.f32 %v960, %v1000
        %v1002 = vpop.f32.mrb[0].mxu0
        %v1003 = vpop.f32.mrb[0].mxu0
        %v1004 = vadd.f32 %v963, %v1003
        %v1005 = vpop.f32.mrb[0].mxu0
        %1006 = vdwg.mxu0
        %v1007 = vadd.f32 %v281, %v1001
        %v1008 = vadd.f32 %v282, %v1004
        %1009 = vst [vmem:[%s249] sm:$0xff] %v1007
        %1010 = vst [vmem:[%s249 + $0x8] sm:$0xff] %v1008
        %s1011 = sand.u32 %s128, 1
        %s1012 = sand.u32 %s128, 1
        %s1013 = smul.addr %s1012, 16
        %s1014 = scalar_lea.vmem [#allocation4], %s1013
        // Predicated region
        $region41: #{linear_feature_compressor.1} parent=31 // pred_check
          %p1015 = pneg %p138
        $region42: #{linear_feature_compressor.1} parent=31 // pred_check_branch
          %1017 = sbr.rel (%p1015) target = $region44
        $region43: #{linear_feature_compressor.1} parent=31 // pred_region
          %s1018 = smul.u32 2, %s22
          %s1019 = smul.addr %s1018, 2
          %s1020 = sadd.s32 %s23, %s1019
          %s1021 = smul.addr %s1020, 8
          %s1022 = scalar_lea.vmem %s3, %s1021
          // Predicated region
          $region45: #{linear_feature_compressor.1} parent=43 // pred_check
            _
          $region46: #{linear_feature_compressor.1} parent=43 // pred_check_branch
            %1024 = sbr.rel (0) target = $region48
          $region47: #{linear_feature_compressor.1} parent=43 // pred_region
            // Predicated region
            $region49: #{linear_feature_compressor.1} parent=47 // pred_check
              _
            $region50: #{linear_feature_compressor.1} parent=47 // pred_check_branch
              %1026 = sbr.rel (0) target = $region52
            $region51: #{linear_feature_compressor.1} parent=47 // pred_region
              // Predicated region
              $region64: #{linear_feature_compressor.1} parent=51 // pred_check
                _
              $region65: #{linear_feature_compressor.1} parent=51 // pred_check_branch
                %1043 = sbr.rel (0) target = $region67
              $region66: #{linear_feature_compressor.1} parent=51 // pred_region
                loop: start=0, step=1, limit=1
                $region68: #{linear_feature_compressor.1} parent=66 // loop_pre_header
                  _
                $region69: #{linear_feature_compressor.1} parent=66 // loop_header
                  %s1045 = sphi 0, %s1049
                  %p1046 = scmp.ge.s32.totalorder %s1045, 1
                  %s1050 = sphi %s1014, %s1014
                  %s1051 = sphi %s1022, %s1022
                $region70: #{linear_feature_compressor.1} parent=66 // loop_header_branch
                  %1048 = sbr.rel (%p1046) target = $region74
                $region71: #{linear_feature_compressor.1} parent=66 // loop_body
                  %v1052 = vld [vmem:[%s1050] sm:$0xff]
                  %1053 = vst [vmem:[%s1051] sm:$0xff] %v1052
                  %v1054 = vld [vmem:[%s1050 + $0x8] sm:$0xff]
                  %1055 = vst [vmem:[%s1051 + $0x10] sm:$0xff] %v1054
                $region72: #{linear_feature_compressor.1} parent=66 // loop_footer
                  %s1049 = sadd.s32 1, %s1045
                $region73: #{linear_feature_compressor.1} parent=66 // loop_footer_branch
                  %1044 = sbr.rel target = $region69
                $region74: #{linear_feature_compressor.1} parent=66 // loop_exit
                  _
              $region67: #{linear_feature_compressor.1} parent=51 // pred_fallthru
                _
              // Predicated region
              $region75: #{linear_feature_compressor.1} parent=51 // pred_check
                _
              $region76: #{linear_feature_compressor.1} parent=51 // pred_check_branch
                %1057 = sbr.rel target = $region78
              $region77: #{linear_feature_compressor.1} parent=51 // pred_region
                _
              $region78: #{linear_feature_compressor.1} parent=51 // pred_fallthru
                _
            $region52: #{linear_feature_compressor.1} parent=47 // pred_fallthru
              _
            // Predicated region
            $region53: #{linear_feature_compressor.1} parent=47 // pred_check
              _
            $region54: #{linear_feature_compressor.1} parent=47 // pred_check_branch
              %1028 = sbr.rel target = $region56
            $region55: #{linear_feature_compressor.1} parent=47 // pred_region
              loop: start=0, step=1, limit=1
              $region57: #{linear_feature_compressor.1} parent=55 // loop_pre_header
                _
              $region58: #{linear_feature_compressor.1} parent=55 // loop_header
                %s1031 = sphi 0, %s1035
                %p1032 = scmp.ge.s32.totalorder %s1031, 1
                %s1036 = sphi %s1014, %s1014
                %s1037 = sphi %s1022, %s1022
              $region59: #{linear_feature_compressor.1} parent=55 // loop_header_branch
                %1034 = sbr.rel (%p1032) target = $region63
              $region60: #{linear_feature_compressor.1} parent=55 // loop_body
                %v1038 = vld [vmem:[%s1036] sm:$0xff]
                %1039 = vst [vmem:[%s1037] sm:$0xff] %v1038
                %v1040 = vld [vmem:[%s1036 + $0x8] sm:$0xff]
                %1041 = vst [vmem:[%s1037 + $0x10] sm:$0xff] %v1040
              $region61: #{linear_feature_compressor.1} parent=55 // loop_footer
                %s1035 = sadd.s32 1, %s1031
              $region62: #{linear_feature_compressor.1} parent=55 // loop_footer_branch
                %1030 = sbr.rel target = $region58
              $region63: #{linear_feature_compressor.1} parent=55 // loop_exit
                _
            $region56: #{linear_feature_compressor.1} parent=47 // pred_fallthru
              _
          $region48: #{linear_feature_compressor.1} parent=43 // pred_fallthru
            _
          %1058 = vnop
        $region44: #{linear_feature_compressor.1} parent=31 // pred_fallthru
          _
      $region32: #{linear_feature_compressor.1} parent=5 // pred_fallthru
        _
      %p1059 = scmp.le.s32.totalorder 2, %s12
      // Predicated region
      $region79: #{linear_feature_compressor.1} parent=5 // pred_check
        %p1060 = pneg %p1059
      $region80: #{linear_feature_compressor.1} parent=5 // pred_check_branch
        %1062 = sbr.rel (%p1060) target = $region82
      $region81: #{linear_feature_compressor.1} parent=5 // pred_region
        %s1063 = ssub.s32 %s12, 2
        // Predicated region
        $region83: #{linear_feature_compressor.1} parent=81 // pred_check
          %p1064 = pneg %p144
        $region84: #{linear_feature_compressor.1} parent=81 // pred_check_branch
          %1066 = sbr.rel (%p1064) target = $region86
        $region85: #{linear_feature_compressor.1} parent=81 // pred_region
          %s1067 = sand.u32 %s129, 1
          %s1068 = sand.u32 %s129, 1
          %s1069 = smul.addr %s1068, 16
          %s1070 = scalar_lea.vmem [#allocation4], %s1069
        $region86: #{linear_feature_compressor.1} parent=81 // pred_fallthru
          _
      $region82: #{linear_feature_compressor.1} parent=5 // pred_fallthru
        _
    $region6: #{linear_feature_compressor.1} parent=1 // loop_footer
      %s16 = sadd.s32 1, %s12
    $region7: #{linear_feature_compressor.1} parent=1 // loop_footer_branch
      %11 = sbr.rel target = $region3
    $region8: #{linear_feature_compressor.1} parent=1 // loop_exit
      _
    %1071 = vsyncpa [#allocation3], 1
    %s1072 = scalar_lea.sflag [#allocation3], 1
    %1073 = vsyncpa %s1072, 1

</llo_original>
